<compile_context>
chip_gen: v6e
topology: v6e:2x2x1
jax: 0.10.0
libtpu: 0.0.40
codegen_flags: <defaults>
</compile_context>

<pallas_src>
import jax
import jax.numpy as jnp
from jax.experimental import pallas as pl
from jax.experimental.pallas import tpu as pltpu


def cross_attention_kernel(x_ref, y_ref, wa_ref, wb_ref, o_ref):
    # x_ref, y_ref : (N, C, M)   per-image channels on sublanes, H*W pixels on lanes
    # wa_ref       : (2C, C)     composed weight acting on x  (= [Wx2@Wx1 ; Wy2@Wy1][:, :C])
    # wb_ref       : (2C, C)     composed weight acting on y  (= [Wx2@Wx1 ; Wy2@Wy1][:, C:])
    # o_ref        : (N, 2C, M)  rows 0..C-1 = out_x, rows C..2C-1 = out_y
    wa = wa_ref[...]
    wb = wb_ref[...]
    # N is tiny and static -> unrolled; each iteration is one full (2C, M) tile:
    # one fused MXU pass per input, sigmoid epilogue, one unmasked full-tile store.
    for n in range(x_ref.shape[0]):
        z = (jnp.dot(wa, x_ref[n], preferred_element_type=jnp.float32)
             + jnp.dot(wb, y_ref[n], preferred_element_type=jnp.float32))   # (2C, M)
        o_ref[n] = (1.0 / (1.0 + jnp.exp(-z))).astype(o_ref.dtype)          # exp -> EUP


def cross_attention(x, y, w_x1, w_x2, w_y1, w_y2):
    """x, y: (N, C, H, W). w_*: PyTorch 1x1 conv weights (C_out, C_in, 1, 1), no bias."""
    N, C, H, W = x.shape
    M = H * W
    two_c = 2 * C

    # NCHW is already (channels, pixels) per image: these reshapes are free, and the
    # concat is replaced by splitting the composed weight along K (no extra HBM traffic).
    x3 = x.reshape(N, C, M).astype(jnp.float32)
    y3 = y.reshape(N, C, M).astype(jnp.float32)

    # Pre-compose the cascaded 1x1 convs (exact: no nonlinearity in between).
    hi = jax.lax.Precision.HIGHEST
    w_eff_x = jnp.matmul(w_x2.reshape(C, two_c), w_x1.reshape(two_c, two_c),
                         precision=hi).astype(jnp.float32)        # (C, 2C)
    w_eff_y = jnp.matmul(w_y2.reshape(C, two_c), w_y1.reshape(two_c, two_c),
                         precision=hi).astype(jnp.float32)        # (C, 2C)
    w_eff = jnp.concatenate([w_eff_x, w_eff_y], axis=0)           # (2C, 2C)
    wa = w_eff[:, :C]                                             # (2C, C) -> acts on x
    wb = w_eff[:, C:]                                             # (2C, C) -> acts on y

    out = pl.pallas_call(
        cross_attention_kernel,
        out_shape=jax.ShapeDtypeStruct((N, two_c, M), jnp.float32),
        in_specs=[
            pl.BlockSpec(memory_space=pltpu.MemorySpace.VMEM),
            pl.BlockSpec(memory_space=pltpu.MemorySpace.VMEM),
            pl.BlockSpec(memory_space=pltpu.MemorySpace.VMEM),
            pl.BlockSpec(memory_space=pltpu.MemorySpace.VMEM),
        ],
        out_specs=pl.BlockSpec(memory_space=pltpu.MemorySpace.VMEM),
    )(x3, y3, wa, wb)

    # Cheap wrapper-side split back to the PyTorch output shapes.
    out_x = out[:, :C].reshape(N, C, H, W)
    out_y = out[:, C:].reshape(N, C, H, W)
    return out_x, out_y


def _conv1x1(inp, w):
    # nn.Conv2d(kernel_size=1, bias=False):  out[n,o,h,w] = sum_c w[o,c] * inp[n,c,h,w]
    return jnp.einsum("nchw,oc->nohw", inp, w.reshape(w.shape[0], w.shape[1]),
                      precision=jax.lax.Precision.HIGHEST)


def _reference(x, y, w_x1, w_x2, w_y1, w_y2):
    out = jnp.concatenate([x, y], axis=1)
    out_x = jax.nn.sigmoid(_conv1x1(_conv1x1(out, w_x1), w_x2))
    out_y = jax.nn.sigmoid(_conv1x1(_conv1x1(out, w_y1), w_y2))
    return out_x, out_y


if __name__ == "__main__":
    key = jax.random.PRNGKey(0)
    k_x, k_y, k_wx1, k_wx2, k_wy1, k_wy2 = jax.random.split(key, 6)

    N, C, H, W = 2, 4, 16, 16          # channel = 4  ->  2C = 8, H*W = 256
    two_c = 2 * C

    x = jax.random.normal(k_x, (N, C, H, W), dtype=jnp.float32)
    y = jax.random.normal(k_y, (N, C, H, W), dtype=jnp.float32)
    w_x1 = jax.random.normal(k_wx1, (two_c, two_c, 1, 1), dtype=jnp.float32) * 0.1
    w_x2 = jax.random.normal(k_wx2, (C, two_c, 1, 1), dtype=jnp.float32) * 0.1
    w_y1 = jax.random.normal(k_wy1, (two_c, two_c, 1, 1), dtype=jnp.float32) * 0.1
    w_y2 = jax.random.normal(k_wy2, (C, two_c, 1, 1), dtype=jnp.float32) * 0.1

    out_x, out_y = jax.block_until_ready(cross_attention(x, y, w_x1, w_x2, w_y1, w_y2))

    ref_x, ref_y = _reference(x, y, w_x1, w_x2, w_y1, w_y2)

    assert out_x.shape == (N, C, H, W) and out_y.shape == (N, C, H, W)
    assert jnp.allclose(out_x, ref_x, atol=1e-5, rtol=1e-5)
    assert jnp.allclose(out_y, ref_y, atol=1e-5, rtol=1e-5)
    print("KERNEL_OK")
</pallas_src>

<mosaic_0001>
module attributes {stable_mosaic.version = 11 : i64} {
  func.func @cross_attention_kernel(%arg0: memref<2x4x256xf32, #tpu.memory_space<vmem>>, %arg1: memref<2x4x256xf32, #tpu.memory_space<vmem>>, %arg2: memref<8x4xf32, #tpu.memory_space<vmem>>, %arg3: memref<8x4xf32, #tpu.memory_space<vmem>>, %arg4: memref<2x8x256xf32, #tpu.memory_space<vmem>>) attributes {dimension_semantics = [], scalar_prefetch = 0 : i64, scratch_operands = 0 : i64, tpu.core_type = #tpu.core_type<tc>} {
    %c0 = arith.constant 0 : index
    %c0_0 = arith.constant 0 : index
    %0 = vector.load %arg2[%c0, %c0_0] : memref<8x4xf32, #tpu.memory_space<vmem>>, vector<8x4xf32>
    %c0_1 = arith.constant 0 : index
    %c0_2 = arith.constant 0 : index
    %1 = vector.load %arg3[%c0_1, %c0_2] : memref<8x4xf32, #tpu.memory_space<vmem>>, vector<8x4xf32>
    %c0_3 = arith.constant 0 : index
    %c0_4 = arith.constant 0 : index
    %c0_5 = arith.constant 0 : index
    %2 = vector.load %arg0[%c0_3, %c0_4, %c0_5] : memref<2x4x256xf32, #tpu.memory_space<vmem>>, vector<1x4x256xf32>
    %3 = vector.shape_cast %2 : vector<1x4x256xf32> to vector<4x256xf32>
    %cst = arith.constant dense<0.000000e+00> : vector<8x256xf32>
    %4 = tpu.matmul %0, %3, %cst {dimension_numbers = #tpu.dot_dimension_numbers<[1], [0], [0], [1], [0, 0, 1, 1], [], []>} : vector<8x4xf32>, vector<4x256xf32>, vector<8x256xf32> -> vector<8x256xf32>
    %c0_6 = arith.constant 0 : index
    %c0_7 = arith.constant 0 : index
    %c0_8 = arith.constant 0 : index
    %5 = vector.load %arg1[%c0_6, %c0_7, %c0_8] : memref<2x4x256xf32, #tpu.memory_space<vmem>>, vector<1x4x256xf32>
    %6 = vector.shape_cast %5 : vector<1x4x256xf32> to vector<4x256xf32>
    %cst_9 = arith.constant dense<0.000000e+00> : vector<8x256xf32>
    %7 = tpu.matmul %1, %6, %cst_9 {dimension_numbers = #tpu.dot_dimension_numbers<[1], [0], [0], [1], [0, 0, 1, 1], [], []>} : vector<8x4xf32>, vector<4x256xf32>, vector<8x256xf32> -> vector<8x256xf32>
    %8 = arith.addf %4, %7 : vector<8x256xf32>
    %cst_10 = arith.constant 0.000000e+00 : f32
    %9 = vector.broadcast %cst_10 : f32 to vector<8x256xf32>
    %10 = arith.subf %9, %8 : vector<8x256xf32>
    %11 = math.exp %10 : vector<8x256xf32>
    %cst_11 = arith.constant 1.000000e+00 : f32
    %12 = vector.broadcast %cst_11 : f32 to vector<8x256xf32>
    %13 = arith.addf %12, %11 : vector<8x256xf32>
    %cst_12 = arith.constant 1.000000e+00 : f32
    %14 = vector.broadcast %cst_12 : f32 to vector<8x256xf32>
    %15 = arith.divf %14, %13 : vector<8x256xf32>
    %c0_13 = arith.constant 0 : index
    %c0_14 = arith.constant 0 : index
    %c0_15 = arith.constant 0 : index
    %16 = vector.load %arg4[%c0_13, %c0_14, %c0_15] : memref<2x8x256xf32, #tpu.memory_space<vmem>>, vector<1x8x256xf32>
    %17 = vector.shape_cast %16 : vector<1x8x256xf32> to vector<8x256xf32>
    %18 = vector.shape_cast %15 : vector<8x256xf32> to vector<1x8x256xf32>
    tpu.vector_store %arg4[%c0_13, %c0_14, %c0_15], %18 {strides = array<i32>} : memref<2x8x256xf32, #tpu.memory_space<vmem>>, vector<1x8x256xf32>,
    %c1 = arith.constant 1 : index
    %c0_16 = arith.constant 0 : index
    %c0_17 = arith.constant 0 : index
    %19 = vector.load %arg0[%c1, %c0_16, %c0_17] : memref<2x4x256xf32, #tpu.memory_space<vmem>>, vector<1x4x256xf32>
    %20 = vector.shape_cast %19 : vector<1x4x256xf32> to vector<4x256xf32>
    %cst_18 = arith.constant dense<0.000000e+00> : vector<8x256xf32>
    %21 = tpu.matmul %0, %20, %cst_18 {dimension_numbers = #tpu.dot_dimension_numbers<[1], [0], [0], [1], [0, 0, 1, 1], [], []>} : vector<8x4xf32>, vector<4x256xf32>, vector<8x256xf32> -> vector<8x256xf32>
    %c1_19 = arith.constant 1 : index
    %c0_20 = arith.constant 0 : index
    %c0_21 = arith.constant 0 : index
    %22 = vector.load %arg1[%c1_19, %c0_20, %c0_21] : memref<2x4x256xf32, #tpu.memory_space<vmem>>, vector<1x4x256xf32>
    %23 = vector.shape_cast %22 : vector<1x4x256xf32> to vector<4x256xf32>
    %cst_22 = arith.constant dense<0.000000e+00> : vector<8x256xf32>
    %24 = tpu.matmul %1, %23, %cst_22 {dimension_numbers = #tpu.dot_dimension_numbers<[1], [0], [0], [1], [0, 0, 1, 1], [], []>} : vector<8x4xf32>, vector<4x256xf32>, vector<8x256xf32> -> vector<8x256xf32>
    %25 = arith.addf %21, %24 : vector<8x256xf32>
    %cst_23 = arith.constant 0.000000e+00 : f32
    %26 = vector.broadcast %cst_23 : f32 to vector<8x256xf32>
    %27 = arith.subf %26, %25 : vector<8x256xf32>
    %28 = math.exp %27 : vector<8x256xf32>
    %cst_24 = arith.constant 1.000000e+00 : f32
    %29 = vector.broadcast %cst_24 : f32 to vector<8x256xf32>
    %30 = arith.addf %29, %28 : vector<8x256xf32>
    %cst_25 = arith.constant 1.000000e+00 : f32
    %31 = vector.broadcast %cst_25 : f32 to vector<8x256xf32>
    %32 = arith.divf %31, %30 : vector<8x256xf32>
    %c1_26 = arith.constant 1 : index
    %c0_27 = arith.constant 0 : index
    %c0_28 = arith.constant 0 : index
    %33 = vector.load %arg4[%c1_26, %c0_27, %c0_28] : memref<2x8x256xf32, #tpu.memory_space<vmem>>, vector<1x8x256xf32>
    %34 = vector.shape_cast %33 : vector<1x8x256xf32> to vector<8x256xf32>
    %35 = vector.shape_cast %32 : vector<8x256xf32> to vector<1x8x256xf32>
    tpu.vector_store %arg4[%c1_26, %c0_27, %c0_28], %35 {strides = array<i32>} : memref<2x8x256xf32, #tpu.memory_space<vmem>>, vector<1x8x256xf32>,
    return
  }
}

</mosaic_0001>

<llo_original>
// kernel: tpu_custom_call.1
$region0: #{tpu_custom_call.1}
  #allocation0 [shape = 'u32[]', space=smem, size = 0x4, offset = 0x4, fixed_abs, tag = 'smem constant byte address 0x4 - core index']
  #allocation1 [shape = 'u32[144,128]{1,0:T(1,128)}', space=vmem, size = 0x12000, scoped, tag = 'internal scratch']
  %s0 = inlined_call_operand.vmem [shape: f32[2,4,256], index: 0, kind: input, shape index: {}]
  %s1 = inlined_call_operand.hbm [shape: f32[2,4,256], index: 1, kind: input, shape index: {}]
  %s2 = inlined_call_operand.vmem [shape: f32[8,4], index: 2, kind: input, shape index: {}]
  %s3 = inlined_call_operand.vmem [shape: f32[8,4], index: 3, kind: input, shape index: {}]
  %s4 = inlined_call_operand.hbm [shape: f32[2,8,256], index: 4, kind: output, shape index: {}]
  %s5 = sld [smem:[#allocation0]]
  $region30: #{tpu_custom_call.1} parent=0
    _
  %s7 = ssub.s32 1, %s5
  %s8 = scalar_select 0, %s7, %s5
  $region1: #{tpu_custom_call.1} parent=0
    #allocation2 [shape = 'u8[8192]{0}', space=vmem, size = 0x2000, scoped, tag = 'input window, operand 1, single buffered']
    #allocation3 [shape = 's32[1]{0}', space=sflag, size = 0x4, scoped, tag = 'scoped memory for tpu_custom_call.1']
    #allocation4 [shape = 's32[1]{0}', space=sflag, size = 0x4, scoped, tag = 'scoped memory for tpu_custom_call.1']
    #allocation5 [shape = 'u8[16384]{0}', space=vmem, size = 0x4000, scoped, tag = 'output window, operand 0, single buffered']
    %9 = vsyncpa [#allocation3], 0
    %10 = vsyncpa [#allocation4], 0
    // Predicated region
    $region2: #{tpu_custom_call.1} parent=1 // pred_check
      _
    $region3: #{tpu_custom_call.1} parent=1 // pred_check_branch
      %12 = sbr.rel (0) target = $region5
    $region4: #{tpu_custom_call.1} parent=1 // pred_region
      _
    $region5: #{tpu_custom_call.1} parent=1 // pred_fallthru
      _
    // Predicated region
    $region6: #{tpu_custom_call.1} parent=1 // pred_check
      _
    $region7: #{tpu_custom_call.1} parent=1 // pred_check_branch
      %14 = sbr.rel (0) target = $region9
    $region8: #{tpu_custom_call.1} parent=1 // pred_region
      %s16 = ssub.s32 256, 256
      %17 = vsyncadd [#allocation3], %s16
      %s18 = sshll.u32 [#allocation2], 4
      %s19 = int_to_ptr.vmem [resolvable:$true] %s18
      %24 = dma.hbm_to_vmem [thread:$0]  %s1, 256, %s19, [#allocation3], 128, 128, 8
    $region9: #{tpu_custom_call.1} parent=1 // pred_fallthru
      _
    // Predicated region
    $region10: #{tpu_custom_call.1} parent=1 // pred_check
      _
    $region11: #{tpu_custom_call.1} parent=1 // pred_check_branch
      %26 = sbr.rel (0) target = $region13
    $region12: #{tpu_custom_call.1} parent=1 // pred_region
      _
    $region13: #{tpu_custom_call.1} parent=1 // pred_fallthru
      _
    // Predicated region
    $region14: #{tpu_custom_call.1} parent=1 // pred_check
      _
    $region15: #{tpu_custom_call.1} parent=1 // pred_check_branch
      %28 = sbr.rel (0) target = $region17
    $region16: #{tpu_custom_call.1} parent=1 // pred_region
      _
    $region17: #{tpu_custom_call.1} parent=1 // pred_fallthru
      _
    // Predicated region
    $region18: #{tpu_custom_call.1} parent=1 // pred_check
      _
    $region19: #{tpu_custom_call.1} parent=1 // pred_check_branch
      %30 = sbr.rel (0) target = $region21
    $region20: #{tpu_custom_call.1} parent=1 // pred_region
      %31 = dma.done [#allocation3], 256
    $region21: #{tpu_custom_call.1} parent=1 // pred_fallthru
      _
    %v32 = vld [vmem:[%s2] sm:$0xff]
    %v33 = vld [vmem:[%s3] sm:$0xff]
    %v34 = vld [vmem:[%s0] sm:$0xff]
    %v35 = vld [vmem:[#allocation2] sm:$0xff]
    %v37 = vcombine.high %v35, %v35
    %vm38 = vcmask 31744
    %v40 = vsel %vm38, %v33, 0
    %vm42 = vcmask 1043456
    %v43 = vsel %vm42, %v35, 0
    %v45 = vsel %vm42, %v37, 0
    %47 = vmatprep.subr.mxu0 0.0
    %48 = vmatpush1.msra.mxu0 0.0
    %49 = vmatprep.subr.mxu0 0.0
    %50 = vmatpush1.msra.mxu0 0.0
    %51 = vmatprep.subr.mxu0 0.0
    %52 = vmatpush1.msra.mxu0 0.0
    %53 = vmatprep.subr.mxu0 0.0
    %54 = vmatpush1.msra.mxu0 0.0
    %55 = vmatprep.subr.mxu0 0.0
    %56 = vmatpush1.msra.mxu0 0.0
    %57 = vmatprep.subr.mxu0 0.0
    %58 = vmatpush1.msra.mxu0 0.0
    %59 = vmatprep.subr.mxu0 0.0
    %60 = vmatpush1.msra.mxu0 0.0
    %61 = vmatprep.subr.mxu0 0.0
    %62 = vmatpush1.msra.mxu0 0.0
    %63 = vmatprep.subr.mxu0 0.0
    %64 = vmatpush1.msra.mxu0 0.0
    %65 = vmatprep.subr.mxu0 0.0
    %66 = vmatpush1.msra.mxu0 0.0
    %67 = vmatprep.subr.mxu0 0.0
    %68 = vmatpush1.msra.mxu0 0.0
    %69 = vmatprep.subr.mxu0 0.0
    %70 = vmatpush1.msra.mxu0 0.0
    %71 = vmatprep.subr.mxu0 0.0
    %72 = vmatpush1.msra.mxu0 0.0
    %73 = vmatprep.subr.mxu0 0.0
    %74 = vmatpush1.msra.mxu0 0.0
    %75 = vmatprep.subr.mxu0 0.0
    %76 = vmatpush1.msra.mxu0 0.0
    %77 = vmatprep.subr.mxu0 %v45
    %78 = vmatpush1.msra.mxu0 %v43
    %79 = vmatprep.subr.mxu0 0.0
    %80 = vmatpush2.msra.mxu0 0.0
    %81 = vmatprep.subr.mxu0 0.0
    %82 = vmatpush2.msra.mxu0 0.0
    %83 = vmatprep.subr.mxu0 0.0
    %84 = vmatpush2.msra.mxu0 0.0
    %85 = vmatprep.subr.mxu0 0.0
    %86 = vmatpush2.msra.mxu0 0.0
    %87 = vmatprep.subr.mxu0 0.0
    %88 = vmatpush2.msra.mxu0 0.0
    %89 = vmatprep.subr.mxu0 0.0
    %90 = vmatpush2.msra.mxu0 0.0
    %91 = vmatprep.subr.mxu0 0.0
    %92 = vmatpush2.msra.mxu0 0.0
    %93 = vmatprep.subr.mxu0 0.0
    %94 = vmatpush2.msra.mxu0 0.0
    %95 = vmatprep.subr.mxu0 0.0
    %96 = vmatpush2.msra.mxu0 0.0
    %97 = vmatprep.subr.mxu0 0.0
    %98 = vmatpush2.msra.mxu0 0.0
    %99 = vmatprep.subr.mxu0 0.0
    %100 = vmatpush2.msra.mxu0 0.0
    %101 = vmatprep.subr.mxu0 0.0
    %102 = vmatpush2.msra.mxu0 0.0
    %103 = vmatprep.subr.mxu0 0.0
    %104 = vmatpush2.msra.mxu0 0.0
    %105 = vmatprep.subr.mxu0 0.0
    %106 = vmatpush2.msra.mxu0 0.0
    %107 = vmatprep.subr.mxu0 0.0
    %108 = vmatpush2.msra.mxu0 0.0
    %109 = vmatprep.subr.mxu0 0.0
    %110 = vmatpush2.msra.mxu0 0.0
    %111 = vmatprep.mubr.f32.mxu0 0.0
    %112 = vmatmul.mubr.f32.gmra.mxu0 %v40
    %v113 = vpop.f32.mrf.mxu0
    %v114 = vadd.f32 0.0, %v113
    %v115 = vpop.f32.mrf.mxu0
    %v116 = vadd.f32 0.0, %v115
    %117 = vdwg.mxu0
    %v119 = vcombine.high %v34, %v34
    %v121 = vsel %vm38, %v32, 0
    %v123 = vsel %vm42, %v34, 0
    %v125 = vsel %vm42, %v119, 0
    %127 = vmatprep.subr.mxu0 0.0
    %128 = vmatpush1.msra.mxu0 0.0
    %129 = vmatprep.subr.mxu0 0.0
    %130 = vmatpush1.msra.mxu0 0.0
    %131 = vmatprep.subr.mxu0 0.0
    %132 = vmatpush1.msra.mxu0 0.0
    %133 = vmatprep.subr.mxu0 0.0
    %134 = vmatpush1.msra.mxu0 0.0
    %135 = vmatprep.subr.mxu0 0.0
    %136 = vmatpush1.msra.mxu0 0.0
    %137 = vmatprep.subr.mxu0 0.0
    %138 = vmatpush1.msra.mxu0 0.0
    %139 = vmatprep.subr.mxu0 0.0
    %140 = vmatpush1.msra.mxu0 0.0
    %141 = vmatprep.subr.mxu0 0.0
    %142 = vmatpush1.msra.mxu0 0.0
    %143 = vmatprep.subr.mxu0 0.0
    %144 = vmatpush1.msra.mxu0 0.0
    %145 = vmatprep.subr.mxu0 0.0
    %146 = vmatpush1.msra.mxu0 0.0
    %147 = vmatprep.subr.mxu0 0.0
    %148 = vmatpush1.msra.mxu0 0.0
    %149 = vmatprep.subr.mxu0 0.0
    %150 = vmatpush1.msra.mxu0 0.0
    %151 = vmatprep.subr.mxu0 0.0
    %152 = vmatpush1.msra.mxu0 0.0
    %153 = vmatprep.subr.mxu0 0.0
    %154 = vmatpush1.msra.mxu0 0.0
    %155 = vmatprep.subr.mxu0 0.0
    %156 = vmatpush1.msra.mxu0 0.0
    %157 = vmatprep.subr.mxu0 %v125
    %158 = vmatpush1.msra.mxu0 %v123
    %159 = vmatprep.subr.mxu0 0.0
    %160 = vmatpush2.msra.mxu0 0.0
    %161 = vmatprep.subr.mxu0 0.0
    %162 = vmatpush2.msra.mxu0 0.0
    %163 = vmatprep.subr.mxu0 0.0
    %164 = vmatpush2.msra.mxu0 0.0
    %165 = vmatprep.subr.mxu0 0.0
    %166 = vmatpush2.msra.mxu0 0.0
    %167 = vmatprep.subr.mxu0 0.0
    %168 = vmatpush2.msra.mxu0 0.0
    %169 = vmatprep.subr.mxu0 0.0
    %170 = vmatpush2.msra.mxu0 0.0
    %171 = vmatprep.subr.mxu0 0.0
    %172 = vmatpush2.msra.mxu0 0.0
    %173 = vmatprep.subr.mxu0 0.0
    %174 = vmatpush2.msra.mxu0 0.0
    %175 = vmatprep.subr.mxu0 0.0
    %176 = vmatpush2.msra.mxu0 0.0
    %177 = vmatprep.subr.mxu0 0.0
    %178 = vmatpush2.msra.mxu0 0.0
    %179 = vmatprep.subr.mxu0 0.0
    %180 = vmatpush2.msra.mxu0 0.0
    %181 = vmatprep.subr.mxu0 0.0
    %182 = vmatpush2.msra.mxu0 0.0
    %183 = vmatprep.subr.mxu0 0.0
    %184 = vmatpush2.msra.mxu0 0.0
    %185 = vmatprep.subr.mxu0 0.0
    %186 = vmatpush2.msra.mxu0 0.0
    %187 = vmatprep.subr.mxu0 0.0
    %188 = vmatpush2.msra.mxu0 0.0
    %189 = vmatprep.subr.mxu0 0.0
    %190 = vmatpush2.msra.mxu0 0.0
    %191 = vmatprep.mubr.f32.mxu0 0.0
    %192 = vmatmul.mubr.f32.gmra.mxu0 %v121
    %v193 = vpop.f32.mrf.mxu0
    %v194 = vadd.f32 %v114, %v193
    %v195 = vpop.f32.mrf.mxu0
    %v196 = vadd.f32 %v116, %v195
    %197 = vdwg.mxu0
    %v198 = vsub.f32 0.0, %v194
    %v199 = vsub.f32 0.0, %v196
    %v200 = vmul.f32 %v198, 1.442695
    %v201 = vpow.pop %v200
    %v202 = vmul.f32 %v199, 1.442695
    %v203 = vpow.pop %v202
    %v204 = vadd.f32 %v201, 1.0
    %v205 = vadd.f32 %v203, 1.0
    %v206 = vrcp.pop %v204
    %v207 = vmul.f32 1.0, %v206
    %v208 = vrcp.pop %v205
    %v209 = vmul.f32 1.0, %v208
    %210 = vst [vmem:[#allocation5] sm:$0xff] %v207
    %211 = vst [vmem:[#allocation5 + $0x8] sm:$0xff] %v209
    %s212 = scalar_lea.vmem %s0, 8
    %v213 = vld [vmem:[%s212] sm:$0xff]
    %s214 = scalar_lea.vmem [#allocation2], 8
    %v215 = vld [vmem:[%s214] sm:$0xff]
    %v217 = vcombine.high %v215, %v215
    %v218 = vsel %vm42, %v215, 0
    %v220 = vsel %vm42, %v217, 0
    %222 = vmatprep.subr.mxu0 0.0
    %223 = vmatpush1.msra.mxu0 0.0
    %224 = vmatprep.subr.mxu0 0.0
    %225 = vmatpush1.msra.mxu0 0.0
    %226 = vmatprep.subr.mxu0 0.0
    %227 = vmatpush1.msra.mxu0 0.0
    %228 = vmatprep.subr.mxu0 0.0
    %229 = vmatpush1.msra.mxu0 0.0
    %230 = vmatprep.subr.mxu0 0.0
    %231 = vmatpush1.msra.mxu0 0.0
    %232 = vmatprep.subr.mxu0 0.0
    %233 = vmatpush1.msra.mxu0 0.0
    %234 = vmatprep.subr.mxu0 0.0
    %235 = vmatpush1.msra.mxu0 0.0
    %236 = vmatprep.subr.mxu0 0.0
    %237 = vmatpush1.msra.mxu0 0.0
    %238 = vmatprep.subr.mxu0 0.0
    %239 = vmatpush1.msra.mxu0 0.0
    %240 = vmatprep.subr.mxu0 0.0
    %241 = vmatpush1.msra.mxu0 0.0
    %242 = vmatprep.subr.mxu0 0.0
    %243 = vmatpush1.msra.mxu0 0.0
    %244 = vmatprep.subr.mxu0 0.0
    %245 = vmatpush1.msra.mxu0 0.0
    %246 = vmatprep.subr.mxu0 0.0
    %247 = vmatpush1.msra.mxu0 0.0
    %248 = vmatprep.subr.mxu0 0.0
    %249 = vmatpush1.msra.mxu0 0.0
    %250 = vmatprep.subr.mxu0 0.0
    %251 = vmatpush1.msra.mxu0 0.0
    %252 = vmatprep.subr.mxu0 %v220
    %253 = vmatpush1.msra.mxu0 %v218
    %254 = vmatprep.subr.mxu0 0.0
    %255 = vmatpush2.msra.mxu0 0.0
    %256 = vmatprep.subr.mxu0 0.0
    %257 = vmatpush2.msra.mxu0 0.0
    %258 = vmatprep.subr.mxu0 0.0
    %259 = vmatpush2.msra.mxu0 0.0
    %260 = vmatprep.subr.mxu0 0.0
    %261 = vmatpush2.msra.mxu0 0.0
    %262 = vmatprep.subr.mxu0 0.0
    %263 = vmatpush2.msra.mxu0 0.0
    %264 = vmatprep.subr.mxu0 0.0
    %265 = vmatpush2.msra.mxu0 0.0
    %266 = vmatprep.subr.mxu0 0.0
    %267 = vmatpush2.msra.mxu0 0.0
    %268 = vmatprep.subr.mxu0 0.0
    %269 = vmatpush2.msra.mxu0 0.0
    %270 = vmatprep.subr.mxu0 0.0
    %271 = vmatpush2.msra.mxu0 0.0
    %272 = vmatprep.subr.mxu0 0.0
    %273 = vmatpush2.msra.mxu0 0.0
    %274 = vmatprep.subr.mxu0 0.0
    %275 = vmatpush2.msra.mxu0 0.0
    %276 = vmatprep.subr.mxu0 0.0
    %277 = vmatpush2.msra.mxu0 0.0
    %278 = vmatprep.subr.mxu0 0.0
    %279 = vmatpush2.msra.mxu0 0.0
    %280 = vmatprep.subr.mxu0 0.0
    %281 = vmatpush2.msra.mxu0 0.0
    %282 = vmatprep.subr.mxu0 0.0
    %283 = vmatpush2.msra.mxu0 0.0
    %284 = vmatprep.subr.mxu0 0.0
    %285 = vmatpush2.msra.mxu0 0.0
    %286 = vmatprep.mubr.f32.mxu0 0.0
    %287 = vmatmul.mubr.f32.gmra.mxu0 %v40
    %v288 = vpop.f32.mrf.mxu0
    %v289 = vadd.f32 0.0, %v288
    %v290 = vpop.f32.mrf.mxu0
    %v291 = vadd.f32 0.0, %v290
    %292 = vdwg.mxu0
    %v294 = vcombine.high %v213, %v213
    %v295 = vsel %vm42, %v213, 0
    %v297 = vsel %vm42, %v294, 0
    %299 = vmatprep.subr.mxu0 0.0
    %300 = vmatpush1.msra.mxu0 0.0
    %301 = vmatprep.subr.mxu0 0.0
    %302 = vmatpush1.msra.mxu0 0.0
    %303 = vmatprep.subr.mxu0 0.0
    %304 = vmatpush1.msra.mxu0 0.0
    %305 = vmatprep.subr.mxu0 0.0
    %306 = vmatpush1.msra.mxu0 0.0
    %307 = vmatprep.subr.mxu0 0.0
    %308 = vmatpush1.msra.mxu0 0.0
    %309 = vmatprep.subr.mxu0 0.0
    %310 = vmatpush1.msra.mxu0 0.0
    %311 = vmatprep.subr.mxu0 0.0
    %312 = vmatpush1.msra.mxu0 0.0
    %313 = vmatprep.subr.mxu0 0.0
    %314 = vmatpush1.msra.mxu0 0.0
    %315 = vmatprep.subr.mxu0 0.0
    %316 = vmatpush1.msra.mxu0 0.0
    %317 = vmatprep.subr.mxu0 0.0
    %318 = vmatpush1.msra.mxu0 0.0
    %319 = vmatprep.subr.mxu0 0.0
    %320 = vmatpush1.msra.mxu0 0.0
    %321 = vmatprep.subr.mxu0 0.0
    %322 = vmatpush1.msra.mxu0 0.0
    %323 = vmatprep.subr.mxu0 0.0
    %324 = vmatpush1.msra.mxu0 0.0
    %325 = vmatprep.subr.mxu0 0.0
    %326 = vmatpush1.msra.mxu0 0.0
    %327 = vmatprep.subr.mxu0 0.0
    %328 = vmatpush1.msra.mxu0 0.0
    %329 = vmatprep.subr.mxu0 %v297
    %330 = vmatpush1.msra.mxu0 %v295
    %331 = vmatprep.subr.mxu0 0.0
    %332 = vmatpush2.msra.mxu0 0.0
    %333 = vmatprep.subr.mxu0 0.0
    %334 = vmatpush2.msra.mxu0 0.0
    %335 = vmatprep.subr.mxu0 0.0
    %336 = vmatpush2.msra.mxu0 0.0
    %337 = vmatprep.subr.mxu0 0.0
    %338 = vmatpush2.msra.mxu0 0.0
    %339 = vmatprep.subr.mxu0 0.0
    %340 = vmatpush2.msra.mxu0 0.0
    %341 = vmatprep.subr.mxu0 0.0
    %342 = vmatpush2.msra.mxu0 0.0
    %343 = vmatprep.subr.mxu0 0.0
    %344 = vmatpush2.msra.mxu0 0.0
    %345 = vmatprep.subr.mxu0 0.0
    %346 = vmatpush2.msra.mxu0 0.0
    %347 = vmatprep.subr.mxu0 0.0
    %348 = vmatpush2.msra.mxu0 0.0
    %349 = vmatprep.subr.mxu0 0.0
    %350 = vmatpush2.msra.mxu0 0.0
    %351 = vmatprep.subr.mxu0 0.0
    %352 = vmatpush2.msra.mxu0 0.0
    %353 = vmatprep.subr.mxu0 0.0
    %354 = vmatpush2.msra.mxu0 0.0
    %355 = vmatprep.subr.mxu0 0.0
    %356 = vmatpush2.msra.mxu0 0.0
    %357 = vmatprep.subr.mxu0 0.0
    %358 = vmatpush2.msra.mxu0 0.0
    %359 = vmatprep.subr.mxu0 0.0
    %360 = vmatpush2.msra.mxu0 0.0
    %361 = vmatprep.subr.mxu0 0.0
    %362 = vmatpush2.msra.mxu0 0.0
    %363 = vmatprep.mubr.f32.mxu0 0.0
    %364 = vmatmul.mubr.f32.gmra.mxu0 %v121
    %v365 = vpop.f32.mrf.mxu0
    %v366 = vadd.f32 %v289, %v365
    %v367 = vpop.f32.mrf.mxu0
    %v368 = vadd.f32 %v291, %v367
    %369 = vdwg.mxu0
    %v370 = vsub.f32 0.0, %v366
    %v371 = vsub.f32 0.0, %v368
    %v372 = vmul.f32 %v370, 1.442695
    %v373 = vpow.pop %v372
    %v374 = vmul.f32 %v371, 1.442695
    %v375 = vpow.pop %v374
    %v376 = vadd.f32 %v373, 1.0
    %v377 = vadd.f32 %v375, 1.0
    %v378 = vrcp.pop %v376
    %v379 = vmul.f32 1.0, %v378
    %v380 = vrcp.pop %v377
    %v381 = vmul.f32 1.0, %v380
    %s382 = scalar_lea.vmem [#allocation5], 16
    %383 = vst [vmem:[%s382] sm:$0xff] %v379
    %384 = vst [vmem:[%s382 + $0x8] sm:$0xff] %v381
    // Predicated region
    $region22: #{tpu_custom_call.1} parent=1 // pred_check
      _
    $region23: #{tpu_custom_call.1} parent=1 // pred_check_branch
      %386 = sbr.rel (0) target = $region25
    $region24: #{tpu_custom_call.1} parent=1 // pred_region
      %s388 = ssub.s32 512, 512
      %389 = vsyncadd [#allocation4], %s388
      %s390 = sshll.u32 [#allocation5], 4
      %s391 = int_to_ptr.vmem [resolvable:$true] %s390
      %396 = dma.vmem_to_hbm [thread:$0]  %s391, 512, %s4, [#allocation4], 256, 256, 16
    $region25: #{tpu_custom_call.1} parent=1 // pred_fallthru
      _
    // Predicated region
    $region26: #{tpu_custom_call.1} parent=1 // pred_check
      _
    $region27: #{tpu_custom_call.1} parent=1 // pred_check_branch
      %398 = sbr.rel (0) target = $region29
    $region28: #{tpu_custom_call.1} parent=1 // pred_region
      %399 = dma.done [#allocation4], 512
    $region29: #{tpu_custom_call.1} parent=1 // pred_fallthru
      _
    %400 = vsyncpa [#allocation3], 1
    %401 = vsyncpa [#allocation4], 1

</llo_original>
